<compile_context>
chip_gen: v6e
topology: v6e:2x2x1
jax: 0.10.0
libtpu: 0.0.40
codegen_flags: <defaults>
</compile_context>

<pallas_src>
import functools

import jax
import jax.numpy as jnp
from jax.experimental import pallas as pl
from jax.experimental.pallas import tpu as pltpu

N_NODES = 16
C_IN = 16
C_OUT = 32
HEADS = 4
LN_EPS = 1e-5
LEAKY_SLOPE = 0.2


def _residual_gat_kernel(x_ref, adj_ref, w_big_ref, pp_ref, out_ref, *,
                         heads, c_in, c_out):
    x = x_ref[...]                     # [N, C_in]
    adj = adj_ref[...]                 # [N, N] (0/1 float mask, adj[i, j]: edge j->i)
    hc = heads * c_out

    # Single lane-dense projection: columns = [x' (H*C_out) | alpha_dst (H) | residual (C_out)].
    proj = jnp.dot(x, w_big_ref[...], preferred_element_type=jnp.float32)   # [N, hc+H+C_out]
    xp = proj[:, :hc]                                   # [N, H*C_out]
    alpha_dst = proj[:, hc:hc + heads]                  # [N, H]   (a_dst[h]·x'_i[h])
    res = proj[:, hc + heads:hc + heads + c_out]        # [N, C_out] residual pre-bias

    # Row-form source alphas for all heads in one shot: alpha_src[h, j] = a_src[h]·x'_j[h].
    a_src_eff = pp_ref[0:heads, 0:c_in]                 # [H, C_in]  (= W_h @ a_src[h], packed)
    alpha_src = jax.lax.dot_general(
        a_src_eff, x, (((1,), (1,)), ((), ())),
        preferred_element_type=jnp.float32)             # [H, N]

    b_gat = pp_ref[heads + 0:heads + 1, 0:c_out]        # [1, C_out]
    gamma = pp_ref[heads + 1:heads + 2, 0:c_out]
    beta = pp_ref[heads + 2:heads + 3, 0:c_out]
    b_res = pp_ref[heads + 3:heads + 4, 0:c_out]

    n = x.shape[0]
    acc = jnp.zeros((n, c_out), dtype=jnp.float32)

    # Static unrolled loop over heads: only VPU masking/softmax + one [N,N]x[N,C_out] matmul each.
    for h in range(heads):
        xp_h = xp[:, h * c_out:(h + 1) * c_out]                   # [N, C_out]
        e = alpha_dst[:, h:h + 1] + alpha_src[h:h + 1, :]         # [N, N]
        e = jnp.where(e > 0, e, LEAKY_SLOPE * e)                  # LeakyReLU(0.2)

        # Masked softmax over sources j (last axis).
        e_m = jnp.where(adj > 0, e, jnp.full_like(e, -1e30))
        row_max = jnp.max(e_m, axis=-1, keepdims=True)
        p = jnp.exp(e_m - row_max) * adj
        denom = jnp.maximum(jnp.sum(p, axis=-1, keepdims=True), 1e-30)
        attn = p * pl.reciprocal(denom, approx=True)              # [N, N]

        acc = acc + jnp.dot(attn, xp_h, preferred_element_type=jnp.float32)

    gat_out = acc * (1.0 / heads) + b_gat                         # concat=False -> mean

    # LayerNorm over C_out.
    mu = jnp.mean(gat_out, axis=-1, keepdims=True)
    diff = gat_out - mu
    var = jnp.mean(diff * diff, axis=-1, keepdims=True)
    y = diff * jax.lax.rsqrt(var + LN_EPS) * gamma + beta

    out_ref[...] = (y + res + b_res).astype(out_ref.dtype)


def _pack_weights(params):
    """Wrapper-side plumbing: fold a_src/a_dst into the projection and pack small params."""
    w_gat = params["w_gat"]                                   # [C_in, H*C_out]
    w3 = w_gat.reshape(C_IN, HEADS, C_OUT)                    # w3[:, h, :] == W_h
    w_alpha_dst = jnp.einsum("chk,hk->ch", w3, params["a_dst"])   # [C_in, H]
    a_src_eff = jnp.einsum("chk,hk->hc", w3, params["a_src"])     # [H, C_in]

    # [C_in, H*C_out + H + C_out]: x' | alpha_dst | residual, one lane-dense matmul in-kernel.
    w_big = jnp.concatenate([w_gat, w_alpha_dst, params["w_res"]], axis=1)

    width = max(C_OUT, C_IN)
    pp = jnp.zeros((HEADS + 4, width), jnp.float32)
    pp = pp.at[0:HEADS, 0:C_IN].set(a_src_eff)
    pp = pp.at[HEADS + 0, 0:C_OUT].set(params["b_gat"].reshape(-1))
    pp = pp.at[HEADS + 1, 0:C_OUT].set(params["gamma"].reshape(-1))
    pp = pp.at[HEADS + 2, 0:C_OUT].set(params["beta"].reshape(-1))
    pp = pp.at[HEADS + 3, 0:C_OUT].set(params["b_res"].reshape(-1))
    return w_big, pp


def residual_gat_layer(x, adj, params):
    n = x.shape[0]
    w_big, pp = _pack_weights(params)
    kernel = functools.partial(_residual_gat_kernel,
                               heads=HEADS, c_in=C_IN, c_out=C_OUT)
    vmem = pl.BlockSpec(memory_space=pltpu.MemorySpace.VMEM)
    return pl.pallas_call(
        kernel,
        out_shape=jax.ShapeDtypeStruct((n, C_OUT), jnp.float32),
        in_specs=[vmem] * 4,
        out_specs=vmem,
    )(x, adj, w_big, pp)


def build_adjacency(edge_index, n):
    # adj[dst, src] = 1 for each edge src -> dst, plus self-loops (PyG add_self_loops=True).
    src, dst = edge_index[0], edge_index[1]
    adj = jnp.zeros((n, n), jnp.float32).at[dst, src].set(1.0)
    adj = jnp.maximum(adj, jnp.eye(n, dtype=jnp.float32))
    return adj


def init_params(key):
    ks = jax.random.split(key, 6)
    scale_gat = 1.0 / jnp.sqrt(C_IN)
    return {
        "w_gat": jax.random.normal(ks[0], (C_IN, HEADS * C_OUT), jnp.float32) * scale_gat,
        "a_src": jax.random.normal(ks[1], (HEADS, C_OUT), jnp.float32) * 0.1,
        "a_dst": jax.random.normal(ks[2], (HEADS, C_OUT), jnp.float32) * 0.1,
        "b_gat": jnp.zeros((1, C_OUT), jnp.float32),
        "gamma": jnp.ones((1, C_OUT), jnp.float32),       # LayerNorm default init
        "beta": jnp.zeros((1, C_OUT), jnp.float32),
        "w_res": jax.random.normal(ks[3], (C_IN, C_OUT), jnp.float32) * scale_gat,
        "b_res": (jax.random.uniform(ks[4], (1, C_OUT), jnp.float32) - 0.5) * 2 * scale_gat,
    }


if __name__ == "__main__":
    key = jax.random.PRNGKey(0)
    k_x, k_e1, k_e2, k_p = jax.random.split(key, 4)

    x = jax.random.normal(k_x, (N_NODES, C_IN), jnp.float32)
    n_edges = 40
    src = jax.random.randint(k_e1, (n_edges,), 0, N_NODES)
    dst = jax.random.randint(k_e2, (n_edges,), 0, N_NODES)
    edge_index = jnp.stack([src, dst], axis=0)          # [2, E], PyG convention

    adj = build_adjacency(edge_index, N_NODES)
    params = init_params(k_p)

    out = residual_gat_layer(x, adj, params)
    out = jax.block_until_ready(out)
    assert out.shape == (N_NODES, C_OUT)
    assert bool(jnp.all(jnp.isfinite(out)))
    print("KERNEL_OK")
</pallas_src>

<mosaic_0001>
module attributes {stable_mosaic.version = 11 : i64} {
  func.func @_residual_gat_kernel(%arg0: memref<16x16xf32, #tpu.memory_space<vmem>>, %arg1: memref<16x16xf32, #tpu.memory_space<vmem>>, %arg2: memref<16x164xf32, #tpu.memory_space<vmem>>, %arg3: memref<8x32xf32, #tpu.memory_space<vmem>>, %arg4: memref<16x32xf32, #tpu.memory_space<vmem>>) attributes {dimension_semantics = [], scalar_prefetch = 0 : i64, scratch_operands = 0 : i64, tpu.core_type = #tpu.core_type<tc>} {
    %c0 = arith.constant 0 : index
    %c0_0 = arith.constant 0 : index
    %0 = vector.load %arg0[%c0, %c0_0] : memref<16x16xf32, #tpu.memory_space<vmem>>, vector<16x16xf32>
    %c0_1 = arith.constant 0 : index
    %c0_2 = arith.constant 0 : index
    %1 = vector.load %arg1[%c0_1, %c0_2] : memref<16x16xf32, #tpu.memory_space<vmem>>, vector<16x16xf32>
    %c0_3 = arith.constant 0 : index
    %c0_4 = arith.constant 0 : index
    %2 = vector.load %arg2[%c0_3, %c0_4] : memref<16x164xf32, #tpu.memory_space<vmem>>, vector<16x164xf32>
    %cst = arith.constant dense<0.000000e+00> : vector<16x164xf32>
    %3 = tpu.matmul %0, %2, %cst {dimension_numbers = #tpu.dot_dimension_numbers<[1], [0], [0], [1], [0, 0, 1, 1], [], []>} : vector<16x16xf32>, vector<16x164xf32>, vector<16x164xf32> -> vector<16x164xf32>
    %4 = vector.extract_strided_slice %3 {offsets = [0, 0], sizes = [16, 128], strides = [1, 1]} : vector<16x164xf32> to vector<16x128xf32>
    %5 = vector.extract_strided_slice %3 {offsets = [0, 128], sizes = [16, 4], strides = [1, 1]} : vector<16x164xf32> to vector<16x4xf32>
    %6 = vector.extract_strided_slice %3 {offsets = [0, 132], sizes = [16, 32], strides = [1, 1]} : vector<16x164xf32> to vector<16x32xf32>
    %c0_5 = arith.constant 0 : index
    %c0_6 = arith.constant 0 : index
    %7 = vector.load %arg3[%c0_5, %c0_6] : memref<8x32xf32, #tpu.memory_space<vmem>>, vector<4x16xf32>
    %cst_7 = arith.constant dense<0.000000e+00> : vector<4x16xf32>
    %8 = tpu.matmul %7, %0, %cst_7 {dimension_numbers = #tpu.dot_dimension_numbers<[1], [1], [0], [0], [0, 0, 1, 0], [], []>} : vector<4x16xf32>, vector<16x16xf32>, vector<4x16xf32> -> vector<4x16xf32>
    %c4 = arith.constant 4 : index
    %c0_8 = arith.constant 0 : index
    %9 = vector.load %arg3[%c4, %c0_8] : memref<8x32xf32, #tpu.memory_space<vmem>>, vector<1x32xf32>
    %c5 = arith.constant 5 : index
    %c0_9 = arith.constant 0 : index
    %10 = vector.load %arg3[%c5, %c0_9] : memref<8x32xf32, #tpu.memory_space<vmem>>, vector<1x32xf32>
    %c6 = arith.constant 6 : index
    %c0_10 = arith.constant 0 : index
    %11 = vector.load %arg3[%c6, %c0_10] : memref<8x32xf32, #tpu.memory_space<vmem>>, vector<1x32xf32>
    %c7 = arith.constant 7 : index
    %c0_11 = arith.constant 0 : index
    %12 = vector.load %arg3[%c7, %c0_11] : memref<8x32xf32, #tpu.memory_space<vmem>>, vector<1x32xf32>
    %cst_12 = arith.constant 0.000000e+00 : f32
    %13 = vector.broadcast %cst_12 : f32 to vector<16x32xf32>
    %14 = vector.extract_strided_slice %4 {offsets = [0, 0], sizes = [16, 32], strides = [1, 1]} : vector<16x128xf32> to vector<16x32xf32>
    %15 = vector.extract_strided_slice %5 {offsets = [0, 0], sizes = [16, 1], strides = [1, 1]} : vector<16x4xf32> to vector<16x1xf32>
    %16 = vector.extract_strided_slice %8 {offsets = [0, 0], sizes = [1, 16], strides = [1, 1]} : vector<4x16xf32> to vector<1x16xf32>
    %17 = vector.broadcast %15 : vector<16x1xf32> to vector<16x16xf32>
    %18 = vector.broadcast %16 : vector<1x16xf32> to vector<16x16xf32>
    %19 = arith.addf %17, %18 : vector<16x16xf32>
    %cst_13 = arith.constant 0.000000e+00 : f32
    %20 = vector.broadcast %cst_13 : f32 to vector<16x16xf32>
    %21 = arith.cmpf ogt, %19, %20 : vector<16x16xf32>
    %cst_14 = arith.constant 2.000000e-01 : f32
    %22 = vector.broadcast %cst_14 : f32 to vector<16x16xf32>
    %23 = arith.mulf %22, %19 : vector<16x16xf32>
    %24 = arith.select %21, %19, %23 : vector<16x16xi1>, vector<16x16xf32>
    %cst_15 = arith.constant 0.000000e+00 : f32
    %25 = vector.broadcast %cst_15 : f32 to vector<16x16xf32>
    %26 = arith.cmpf ogt, %1, %25 : vector<16x16xf32>
    %cst_16 = arith.constant -1.000000e+30 : f32
    %27 = vector.broadcast %cst_16 : f32 to vector<16x16xf32>
    %28 = arith.select %26, %24, %27 : vector<16x16xi1>, vector<16x16xf32>
    %cst_17 = arith.constant dense<0xFF800000> : vector<16xf32>
    %29 = vector.multi_reduction <maximumf>, %28, %cst_17 [1] : vector<16x16xf32> to vector<16xf32>
    %30 = vector.shape_cast %29 : vector<16xf32> to vector<16x1xf32>
    %31 = vector.broadcast %30 : vector<16x1xf32> to vector<16x16xf32>
    %32 = arith.subf %28, %31 : vector<16x16xf32>
    %33 = math.exp %32 : vector<16x16xf32>
    %34 = arith.mulf %33, %1 : vector<16x16xf32>
    %cst_18 = arith.constant dense<0.000000e+00> : vector<16xf32>
    %35 = vector.multi_reduction <add>, %34, %cst_18 [1] : vector<16x16xf32> to vector<16xf32>
    %36 = vector.shape_cast %35 : vector<16xf32> to vector<16x1xf32>
    %cst_19 = arith.constant 1.000000e-30 : f32
    %37 = vector.broadcast %cst_19 : f32 to vector<16x1xf32>
    %38 = arith.maximumf %36, %37 : vector<16x1xf32>
    %39 = tpu.reciprocal %38 {approx = true} : vector<16x1xf32> -> vector<16x1xf32>
    %40 = vector.broadcast %39 : vector<16x1xf32> to vector<16x16xf32>
    %41 = arith.mulf %34, %40 : vector<16x16xf32>
    %cst_20 = arith.constant dense<0.000000e+00> : vector<16x32xf32>
    %42 = tpu.matmul %41, %14, %cst_20 {dimension_numbers = #tpu.dot_dimension_numbers<[1], [0], [0], [1], [0, 0, 1, 1], [], []>} : vector<16x16xf32>, vector<16x32xf32>, vector<16x32xf32> -> vector<16x32xf32>
    %43 = arith.addf %13, %42 : vector<16x32xf32>
    %44 = vector.extract_strided_slice %4 {offsets = [0, 32], sizes = [16, 32], strides = [1, 1]} : vector<16x128xf32> to vector<16x32xf32>
    %45 = vector.extract_strided_slice %5 {offsets = [0, 1], sizes = [16, 1], strides = [1, 1]} : vector<16x4xf32> to vector<16x1xf32>
    %46 = vector.extract_strided_slice %8 {offsets = [1, 0], sizes = [1, 16], strides = [1, 1]} : vector<4x16xf32> to vector<1x16xf32>
    %47 = vector.broadcast %45 : vector<16x1xf32> to vector<16x16xf32>
    %48 = vector.broadcast %46 : vector<1x16xf32> to vector<16x16xf32>
    %49 = arith.addf %47, %48 : vector<16x16xf32>
    %cst_21 = arith.constant 0.000000e+00 : f32
    %50 = vector.broadcast %cst_21 : f32 to vector<16x16xf32>
    %51 = arith.cmpf ogt, %49, %50 : vector<16x16xf32>
    %cst_22 = arith.constant 2.000000e-01 : f32
    %52 = vector.broadcast %cst_22 : f32 to vector<16x16xf32>
    %53 = arith.mulf %52, %49 : vector<16x16xf32>
    %54 = arith.select %51, %49, %53 : vector<16x16xi1>, vector<16x16xf32>
    %cst_23 = arith.constant 0.000000e+00 : f32
    %55 = vector.broadcast %cst_23 : f32 to vector<16x16xf32>
    %56 = arith.cmpf ogt, %1, %55 : vector<16x16xf32>
    %cst_24 = arith.constant -1.000000e+30 : f32
    %57 = vector.broadcast %cst_24 : f32 to vector<16x16xf32>
    %58 = arith.select %56, %54, %57 : vector<16x16xi1>, vector<16x16xf32>
    %cst_25 = arith.constant dense<0xFF800000> : vector<16xf32>
    %59 = vector.multi_reduction <maximumf>, %58, %cst_25 [1] : vector<16x16xf32> to vector<16xf32>
    %60 = vector.shape_cast %59 : vector<16xf32> to vector<16x1xf32>
    %61 = vector.broadcast %60 : vector<16x1xf32> to vector<16x16xf32>
    %62 = arith.subf %58, %61 : vector<16x16xf32>
    %63 = math.exp %62 : vector<16x16xf32>
    %64 = arith.mulf %63, %1 : vector<16x16xf32>
    %cst_26 = arith.constant dense<0.000000e+00> : vector<16xf32>
    %65 = vector.multi_reduction <add>, %64, %cst_26 [1] : vector<16x16xf32> to vector<16xf32>
    %66 = vector.shape_cast %65 : vector<16xf32> to vector<16x1xf32>
    %cst_27 = arith.constant 1.000000e-30 : f32
    %67 = vector.broadcast %cst_27 : f32 to vector<16x1xf32>
    %68 = arith.maximumf %66, %67 : vector<16x1xf32>
    %69 = tpu.reciprocal %68 {approx = true} : vector<16x1xf32> -> vector<16x1xf32>
    %70 = vector.broadcast %69 : vector<16x1xf32> to vector<16x16xf32>
    %71 = arith.mulf %64, %70 : vector<16x16xf32>
    %cst_28 = arith.constant dense<0.000000e+00> : vector<16x32xf32>
    %72 = tpu.matmul %71, %44, %cst_28 {dimension_numbers = #tpu.dot_dimension_numbers<[1], [0], [0], [1], [0, 0, 1, 1], [], []>} : vector<16x16xf32>, vector<16x32xf32>, vector<16x32xf32> -> vector<16x32xf32>
    %73 = arith.addf %43, %72 : vector<16x32xf32>
    %74 = vector.extract_strided_slice %4 {offsets = [0, 64], sizes = [16, 32], strides = [1, 1]} : vector<16x128xf32> to vector<16x32xf32>
    %75 = vector.extract_strided_slice %5 {offsets = [0, 2], sizes = [16, 1], strides = [1, 1]} : vector<16x4xf32> to vector<16x1xf32>
    %76 = vector.extract_strided_slice %8 {offsets = [2, 0], sizes = [1, 16], strides = [1, 1]} : vector<4x16xf32> to vector<1x16xf32>
    %77 = vector.broadcast %75 : vector<16x1xf32> to vector<16x16xf32>
    %78 = vector.broadcast %76 : vector<1x16xf32> to vector<16x16xf32>
    %79 = arith.addf %77, %78 : vector<16x16xf32>
    %cst_29 = arith.constant 0.000000e+00 : f32
    %80 = vector.broadcast %cst_29 : f32 to vector<16x16xf32>
    %81 = arith.cmpf ogt, %79, %80 : vector<16x16xf32>
    %cst_30 = arith.constant 2.000000e-01 : f32
    %82 = vector.broadcast %cst_30 : f32 to vector<16x16xf32>
    %83 = arith.mulf %82, %79 : vector<16x16xf32>
    %84 = arith.select %81, %79, %83 : vector<16x16xi1>, vector<16x16xf32>
    %cst_31 = arith.constant 0.000000e+00 : f32
    %85 = vector.broadcast %cst_31 : f32 to vector<16x16xf32>
    %86 = arith.cmpf ogt, %1, %85 : vector<16x16xf32>
    %cst_32 = arith.constant -1.000000e+30 : f32
    %87 = vector.broadcast %cst_32 : f32 to vector<16x16xf32>
    %88 = arith.select %86, %84, %87 : vector<16x16xi1>, vector<16x16xf32>
    %cst_33 = arith.constant dense<0xFF800000> : vector<16xf32>
    %89 = vector.multi_reduction <maximumf>, %88, %cst_33 [1] : vector<16x16xf32> to vector<16xf32>
    %90 = vector.shape_cast %89 : vector<16xf32> to vector<16x1xf32>
    %91 = vector.broadcast %90 : vector<16x1xf32> to vector<16x16xf32>
    %92 = arith.subf %88, %91 : vector<16x16xf32>
    %93 = math.exp %92 : vector<16x16xf32>
    %94 = arith.mulf %93, %1 : vector<16x16xf32>
    %cst_34 = arith.constant dense<0.000000e+00> : vector<16xf32>
    %95 = vector.multi_reduction <add>, %94, %cst_34 [1] : vector<16x16xf32> to vector<16xf32>
    %96 = vector.shape_cast %95 : vector<16xf32> to vector<16x1xf32>
    %cst_35 = arith.constant 1.000000e-30 : f32
    %97 = vector.broadcast %cst_35 : f32 to vector<16x1xf32>
    %98 = arith.maximumf %96, %97 : vector<16x1xf32>
    %99 = tpu.reciprocal %98 {approx = true} : vector<16x1xf32> -> vector<16x1xf32>
    %100 = vector.broadcast %99 : vector<16x1xf32> to vector<16x16xf32>
    %101 = arith.mulf %94, %100 : vector<16x16xf32>
    %cst_36 = arith.constant dense<0.000000e+00> : vector<16x32xf32>
    %102 = tpu.matmul %101, %74, %cst_36 {dimension_numbers = #tpu.dot_dimension_numbers<[1], [0], [0], [1], [0, 0, 1, 1], [], []>} : vector<16x16xf32>, vector<16x32xf32>, vector<16x32xf32> -> vector<16x32xf32>
    %103 = arith.addf %73, %102 : vector<16x32xf32>
    %104 = vector.extract_strided_slice %4 {offsets = [0, 96], sizes = [16, 32], strides = [1, 1]} : vector<16x128xf32> to vector<16x32xf32>
    %105 = vector.extract_strided_slice %5 {offsets = [0, 3], sizes = [16, 1], strides = [1, 1]} : vector<16x4xf32> to vector<16x1xf32>
    %106 = vector.extract_strided_slice %8 {offsets = [3, 0], sizes = [1, 16], strides = [1, 1]} : vector<4x16xf32> to vector<1x16xf32>
    %107 = vector.broadcast %105 : vector<16x1xf32> to vector<16x16xf32>
    %108 = vector.broadcast %106 : vector<1x16xf32> to vector<16x16xf32>
    %109 = arith.addf %107, %108 : vector<16x16xf32>
    %cst_37 = arith.constant 0.000000e+00 : f32
    %110 = vector.broadcast %cst_37 : f32 to vector<16x16xf32>
    %111 = arith.cmpf ogt, %109, %110 : vector<16x16xf32>
    %cst_38 = arith.constant 2.000000e-01 : f32
    %112 = vector.broadcast %cst_38 : f32 to vector<16x16xf32>
    %113 = arith.mulf %112, %109 : vector<16x16xf32>
    %114 = arith.select %111, %109, %113 : vector<16x16xi1>, vector<16x16xf32>
    %cst_39 = arith.constant 0.000000e+00 : f32
    %115 = vector.broadcast %cst_39 : f32 to vector<16x16xf32>
    %116 = arith.cmpf ogt, %1, %115 : vector<16x16xf32>
    %cst_40 = arith.constant -1.000000e+30 : f32
    %117 = vector.broadcast %cst_40 : f32 to vector<16x16xf32>
    %118 = arith.select %116, %114, %117 : vector<16x16xi1>, vector<16x16xf32>
    %cst_41 = arith.constant dense<0xFF800000> : vector<16xf32>
    %119 = vector.multi_reduction <maximumf>, %118, %cst_41 [1] : vector<16x16xf32> to vector<16xf32>
    %120 = vector.shape_cast %119 : vector<16xf32> to vector<16x1xf32>
    %121 = vector.broadcast %120 : vector<16x1xf32> to vector<16x16xf32>
    %122 = arith.subf %118, %121 : vector<16x16xf32>
    %123 = math.exp %122 : vector<16x16xf32>
    %124 = arith.mulf %123, %1 : vector<16x16xf32>
    %cst_42 = arith.constant dense<0.000000e+00> : vector<16xf32>
    %125 = vector.multi_reduction <add>, %124, %cst_42 [1] : vector<16x16xf32> to vector<16xf32>
    %126 = vector.shape_cast %125 : vector<16xf32> to vector<16x1xf32>
    %cst_43 = arith.constant 1.000000e-30 : f32
    %127 = vector.broadcast %cst_43 : f32 to vector<16x1xf32>
    %128 = arith.maximumf %126, %127 : vector<16x1xf32>
    %129 = tpu.reciprocal %128 {approx = true} : vector<16x1xf32> -> vector<16x1xf32>
    %130 = vector.broadcast %129 : vector<16x1xf32> to vector<16x16xf32>
    %131 = arith.mulf %124, %130 : vector<16x16xf32>
    %cst_44 = arith.constant dense<0.000000e+00> : vector<16x32xf32>
    %132 = tpu.matmul %131, %104, %cst_44 {dimension_numbers = #tpu.dot_dimension_numbers<[1], [0], [0], [1], [0, 0, 1, 1], [], []>} : vector<16x16xf32>, vector<16x32xf32>, vector<16x32xf32> -> vector<16x32xf32>
    %133 = arith.addf %103, %132 : vector<16x32xf32>
    %cst_45 = arith.constant 2.500000e-01 : f32
    %134 = vector.broadcast %cst_45 : f32 to vector<16x32xf32>
    %135 = arith.mulf %133, %134 : vector<16x32xf32>
    %136 = vector.broadcast %9 : vector<1x32xf32> to vector<16x32xf32>
    %137 = arith.addf %135, %136 : vector<16x32xf32>
    %cst_46 = arith.constant dense<0.000000e+00> : vector<16xf32>
    %138 = vector.multi_reduction <add>, %137, %cst_46 [1] : vector<16x32xf32> to vector<16xf32>
    %139 = vector.shape_cast %138 : vector<16xf32> to vector<16x1xf32>
    %cst_47 = arith.constant 3.200000e+01 : f32
    %140 = vector.broadcast %cst_47 : f32 to vector<16x1xf32>
    %141 = arith.divf %139, %140 : vector<16x1xf32>
    %142 = vector.broadcast %141 : vector<16x1xf32> to vector<16x32xf32>
    %143 = arith.subf %137, %142 : vector<16x32xf32>
    %144 = arith.mulf %143, %143 : vector<16x32xf32>
    %cst_48 = arith.constant dense<0.000000e+00> : vector<16xf32>
    %145 = vector.multi_reduction <add>, %144, %cst_48 [1] : vector<16x32xf32> to vector<16xf32>
    %146 = vector.shape_cast %145 : vector<16xf32> to vector<16x1xf32>
    %cst_49 = arith.constant 3.200000e+01 : f32
    %147 = vector.broadcast %cst_49 : f32 to vector<16x1xf32>
    %148 = arith.divf %146, %147 : vector<16x1xf32>
    %cst_50 = arith.constant 9.99999974E-6 : f32
    %149 = vector.broadcast %cst_50 : f32 to vector<16x1xf32>
    %150 = arith.addf %148, %149 : vector<16x1xf32>
    %151 = math.rsqrt %150 : vector<16x1xf32>
    %152 = vector.broadcast %151 : vector<16x1xf32> to vector<16x32xf32>
    %153 = arith.mulf %143, %152 : vector<16x32xf32>
    %154 = vector.broadcast %10 : vector<1x32xf32> to vector<16x32xf32>
    %155 = arith.mulf %153, %154 : vector<16x32xf32>
    %156 = vector.broadcast %11 : vector<1x32xf32> to vector<16x32xf32>
    %157 = arith.addf %155, %156 : vector<16x32xf32>
    %158 = arith.addf %157, %6 : vector<16x32xf32>
    %159 = vector.broadcast %12 : vector<1x32xf32> to vector<16x32xf32>
    %160 = arith.addf %158, %159 : vector<16x32xf32>
    %c0_51 = arith.constant 0 : index
    %c0_52 = arith.constant 0 : index
    %161 = vector.load %arg4[%c0_51, %c0_52] : memref<16x32xf32, #tpu.memory_space<vmem>>, vector<16x32xf32>
    tpu.vector_store %arg4[%c0_51, %c0_52], %160 {strides = array<i32>} : memref<16x32xf32, #tpu.memory_space<vmem>>, vector<16x32xf32>,
    return
  }
}

</mosaic_0001>

<llo_original>
// kernel: tpu_custom_call.1
$region0: #{tpu_custom_call.1}
  #allocation0 [shape = 'u32[]', space=smem, size = 0x4, offset = 0x4, fixed_abs, tag = 'smem constant byte address 0x4 - core index']
  #allocation1 [shape = 'u32[144,128]{1,0:T(1,128)}', space=vmem, size = 0x12000, scoped, tag = 'internal scratch']
  %s0 = inlined_call_operand.hbm [shape: f32[16,16], index: 0, kind: input, shape index: {}]
  %s1 = inlined_call_operand.hbm [shape: f32[16,16], index: 1, kind: input, shape index: {}]
  %s2 = inlined_call_operand.hbm [shape: f32[16,164], index: 2, kind: input, shape index: {}]
  %s3 = inlined_call_operand.hbm [shape: f32[8,32], index: 3, kind: input, shape index: {}]
  %s4 = inlined_call_operand.hbm [shape: f32[16,32], index: 4, kind: output, shape index: {}]
  %s5 = sld [smem:[#allocation0]]
  $region42: #{tpu_custom_call.1} parent=0
    _
  %s7 = ssub.s32 1, %s5
  %s8 = scalar_select 0, %s7, %s5
  $region1: #{tpu_custom_call.1} parent=0
    #allocation2 [shape = 'u8[8192]{0}', space=vmem, size = 0x2000, scoped, tag = 'input window, operand 0, single buffered']
    #allocation3 [shape = 's32[1]{0}', space=sflag, size = 0x4, scoped, tag = 'scoped memory for tpu_custom_call.1']
    #allocation4 [shape = 's32[1]{0}', space=sflag, size = 0x4, scoped, tag = 'scoped memory for tpu_custom_call.1']
    #allocation5 [shape = 'u8[8192]{0}', space=vmem, size = 0x2000, scoped, tag = 'input window, operand 1, single buffered']
    #allocation6 [shape = 's32[1]{0}', space=sflag, size = 0x4, scoped, tag = 'scoped memory for tpu_custom_call.1']
    #allocation7 [shape = 'u8[16384]{0}', space=vmem, size = 0x4000, scoped, tag = 'input window, operand 2, single buffered']
    #allocation8 [shape = 'u8[4096]{0}', space=vmem, size = 0x1000, scoped, tag = 'input window, operand 3, single buffered']
    #allocation9 [shape = 's32[1]{0}', space=sflag, size = 0x4, scoped, tag = 'scoped memory for tpu_custom_call.1']
    #allocation10 [shape = 'u8[8192]{0}', space=vmem, size = 0x2000, scoped, tag = 'output window, operand 0, single buffered']
    %9 = vsyncpa [#allocation3], 0
    %10 = vsyncpa [#allocation6], 0
    %11 = vsyncpa [#allocation9], 0
    %12 = vsyncpa [#allocation4], 0
    // Predicated region
    $region2: #{tpu_custom_call.1} parent=1 // pred_check
      _
    $region3: #{tpu_custom_call.1} parent=1 // pred_check_branch
      %14 = sbr.rel (0) target = $region5
    $region4: #{tpu_custom_call.1} parent=1 // pred_region
      %s16 = ssub.s32 256, 256
      %17 = vsyncadd [#allocation3], %s16
      %s18 = sshll.u32 [#allocation2], 4
      %s19 = int_to_ptr.vmem [resolvable:$true] %s18
      %24 = dma.hbm_to_vmem [thread:$0]  %s0, 256, %s19, [#allocation3], 128, 128, 8
    $region5: #{tpu_custom_call.1} parent=1 // pred_fallthru
      _
    // Predicated region
    $region6: #{tpu_custom_call.1} parent=1 // pred_check
      _
    $region7: #{tpu_custom_call.1} parent=1 // pred_check_branch
      %26 = sbr.rel (0) target = $region9
    $region8: #{tpu_custom_call.1} parent=1 // pred_region
      %s28 = ssub.s32 256, 256
      %29 = vsyncadd [#allocation6], %s28
      %s30 = sshll.u32 [#allocation5], 4
      %s31 = int_to_ptr.vmem [resolvable:$true] %s30
      %36 = dma.hbm_to_vmem [thread:$0]  %s1, 256, %s31, [#allocation6], 128, 128, 8
    $region9: #{tpu_custom_call.1} parent=1 // pred_fallthru
      _
    // Predicated region
    $region10: #{tpu_custom_call.1} parent=1 // pred_check
      _
    $region11: #{tpu_custom_call.1} parent=1 // pred_check_branch
      %38 = sbr.rel (0) target = $region13
    $region12: #{tpu_custom_call.1} parent=1 // pred_region
      %s40 = ssub.s32 512, 512
      %41 = vsyncadd [#allocation6], %s40
      %s42 = sshll.u32 [#allocation7], 4
      %s43 = int_to_ptr.vmem [resolvable:$true] %s42
      %48 = dma.hbm_to_vmem [thread:$0]  %s2, 512, %s43, [#allocation6], 256, 256, 16
    $region13: #{tpu_custom_call.1} parent=1 // pred_fallthru
      _
    // Predicated region
    $region14: #{tpu_custom_call.1} parent=1 // pred_check
      _
    $region15: #{tpu_custom_call.1} parent=1 // pred_check_branch
      %50 = sbr.rel (0) target = $region17
    $region16: #{tpu_custom_call.1} parent=1 // pred_region
      %s52 = ssub.s32 128, 128
      %53 = vsyncadd [#allocation9], %s52
      %s55 = sshll.u32 [#allocation8], 4
      %s56 = int_to_ptr.vmem [resolvable:$true] %s55
      %58 = dma.hbm_to_vmem [thread:$0]  %s3, 128, %s56, [#allocation9]
    $region17: #{tpu_custom_call.1} parent=1 // pred_fallthru
      _
    // Predicated region
    $region18: #{tpu_custom_call.1} parent=1 // pred_check
      _
    $region19: #{tpu_custom_call.1} parent=1 // pred_check_branch
      %60 = sbr.rel (0) target = $region21
    $region20: #{tpu_custom_call.1} parent=1 // pred_region
      %61 = dma.done [#allocation3], 256
    $region21: #{tpu_custom_call.1} parent=1 // pred_fallthru
      _
    // Predicated region
    $region22: #{tpu_custom_call.1} parent=1 // pred_check
      _
    $region23: #{tpu_custom_call.1} parent=1 // pred_check_branch
      %63 = sbr.rel (0) target = $region25
    $region24: #{tpu_custom_call.1} parent=1 // pred_region
      %64 = dma.done [#allocation6], 256
    $region25: #{tpu_custom_call.1} parent=1 // pred_fallthru
      _
    // Predicated region
    $region26: #{tpu_custom_call.1} parent=1 // pred_check
      _
    $region27: #{tpu_custom_call.1} parent=1 // pred_check_branch
      %66 = sbr.rel (0) target = $region29
    $region28: #{tpu_custom_call.1} parent=1 // pred_region
      %67 = dma.done [#allocation6], 512
    $region29: #{tpu_custom_call.1} parent=1 // pred_fallthru
      _
    // Predicated region
    $region30: #{tpu_custom_call.1} parent=1 // pred_check
      _
    $region31: #{tpu_custom_call.1} parent=1 // pred_check_branch
      %69 = sbr.rel (0) target = $region33
    $region32: #{tpu_custom_call.1} parent=1 // pred_region
      %70 = dma.done [#allocation9], 128
    $region33: #{tpu_custom_call.1} parent=1 // pred_fallthru
      _
    %v71 = vld [vmem:[#allocation2] sm:$0xff]
    %v72 = vld [vmem:[#allocation2 + $0x8] sm:$0xff]
    %v73 = vld [vmem:[#allocation5] sm:$0xff]
    %v74 = vld [vmem:[#allocation5 + $0x8] sm:$0xff]
    %v75 = vld [vmem:[#allocation7] sm:$0xff]
    %v76 = vld [vmem:[#allocation7 + $0x8] sm:$0xff]
    %v77 = vld [vmem:[#allocation7 + $0x10] sm:$0xff]
    %v78 = vld [vmem:[#allocation7 + $0x18] sm:$0xff]
    %vm79 = vcmask 130048
    %v81 = vsel %vm79, %v71, 0
    %v84 = vsel %vm79, %v72, 0
    %86 = vmatprep.subr.mxu0 0.0
    %87 = vmatpush1.msra.mxu0 0.0
    %88 = vmatprep.subr.mxu0 0.0
    %89 = vmatpush1.msra.mxu0 0.0
    %90 = vmatprep.subr.mxu0 0.0
    %91 = vmatpush1.msra.mxu0 0.0
    %92 = vmatprep.subr.mxu0 0.0
    %93 = vmatpush1.msra.mxu0 0.0
    %94 = vmatprep.subr.mxu0 0.0
    %95 = vmatpush1.msra.mxu0 0.0
    %96 = vmatprep.subr.mxu0 0.0
    %97 = vmatpush1.msra.mxu0 0.0
    %98 = vmatprep.subr.mxu0 0.0
    %99 = vmatpush1.msra.mxu0 0.0
    %100 = vmatprep.subr.mxu0 0.0
    %101 = vmatpush1.msra.mxu0 0.0
    %102 = vmatprep.subr.mxu0 0.0
    %103 = vmatpush1.msra.mxu0 0.0
    %104 = vmatprep.subr.mxu0 0.0
    %105 = vmatpush1.msra.mxu0 0.0
    %106 = vmatprep.subr.mxu0 0.0
    %107 = vmatpush1.msra.mxu0 0.0
    %108 = vmatprep.subr.mxu0 0.0
    %109 = vmatpush1.msra.mxu0 0.0
    %110 = vmatprep.subr.mxu0 0.0
    %111 = vmatpush1.msra.mxu0 0.0
    %112 = vmatprep.subr.mxu0 0.0
    %113 = vmatpush1.msra.mxu0 0.0
    %114 = vmatprep.subr.mxu0 %v78
    %115 = vmatpush1.msra.mxu0 %v77
    %116 = vmatprep.subr.mxu0 %v76
    %117 = vmatpush1.msra.mxu0 %v75
    %118 = vmatprep.subr.mxu0 0.0
    %119 = vmatpush2.msra.mxu0 0.0
    %120 = vmatprep.subr.mxu0 0.0
    %121 = vmatpush2.msra.mxu0 0.0
    %122 = vmatprep.subr.mxu0 0.0
    %123 = vmatpush2.msra.mxu0 0.0
    %124 = vmatprep.subr.mxu0 0.0
    %125 = vmatpush2.msra.mxu0 0.0
    %126 = vmatprep.subr.mxu0 0.0
    %127 = vmatpush2.msra.mxu0 0.0
    %128 = vmatprep.subr.mxu0 0.0
    %129 = vmatpush2.msra.mxu0 0.0
    %130 = vmatprep.subr.mxu0 0.0
    %131 = vmatpush2.msra.mxu0 0.0
    %132 = vmatprep.subr.mxu0 0.0
    %133 = vmatpush2.msra.mxu0 0.0
    %134 = vmatprep.subr.mxu0 0.0
    %135 = vmatpush2.msra.mxu0 0.0
    %136 = vmatprep.subr.mxu0 0.0
    %137 = vmatpush2.msra.mxu0 0.0
    %138 = vmatprep.subr.mxu0 0.0
    %139 = vmatpush2.msra.mxu0 0.0
    %140 = vmatprep.subr.mxu0 0.0
    %141 = vmatpush2.msra.mxu0 0.0
    %142 = vmatprep.subr.mxu0 0.0
    %143 = vmatpush2.msra.mxu0 0.0
    %144 = vmatprep.subr.mxu0 0.0
    %145 = vmatpush2.msra.mxu0 0.0
    %146 = vmatprep.subr.mxu0 0.0
    %147 = vmatpush2.msra.mxu0 0.0
    %148 = vmatprep.subr.mxu0 0.0
    %149 = vmatpush2.msra.mxu0 0.0
    %150 = vmatprep.mubr.f32.mxu0 0.0
    %151 = vmatmul.mubr.f32.gmra.mxu0 %v81
    %v152 = vpop.f32.mrf.mxu0
    %v153 = vadd.f32 0.0, %v152
    %v154 = vpop.f32.mrf.mxu0
    %v155 = vadd.f32 0.0, %v154
    %156 = vmatprep.mubr.f32.mxu0 0.0
    %157 = vmatmul.mubr.f32.gmra.mxu0 %v84
    %v158 = vpop.f32.mrf.mxu0
    %v159 = vadd.f32 0.0, %v158
    %v160 = vpop.f32.mrf.mxu0
    %v161 = vadd.f32 0.0, %v160
    %162 = vdwg.mxu0
    %v163 = vld [vmem:[#allocation8] sm:$0xf]
    %v165 = vsel %vm79, %v163, 0
    %167 = vmatprep.subr.mxu0 0.0
    %168 = vmatpush1.xpose.msra.mxu0 0.0
    %169 = vmatprep.subr.mxu0 0.0
    %170 = vmatpush1.xpose.msra.mxu0 0.0
    %171 = vmatprep.subr.mxu0 0.0
    %172 = vmatpush1.xpose.msra.mxu0 0.0
    %173 = vmatprep.subr.mxu0 0.0
    %174 = vmatpush1.xpose.msra.mxu0 0.0
    %175 = vmatprep.subr.mxu0 0.0
    %176 = vmatpush1.xpose.msra.mxu0 0.0
    %177 = vmatprep.subr.mxu0 0.0
    %178 = vmatpush1.xpose.msra.mxu0 0.0
    %179 = vmatprep.subr.mxu0 0.0
    %180 = vmatpush1.xpose.msra.mxu0 0.0
    %181 = vmatprep.subr.mxu0 0.0
    %182 = vmatpush1.xpose.msra.mxu0 0.0
    %183 = vmatprep.subr.mxu0 0.0
    %184 = vmatpush1.xpose.msra.mxu0 0.0
    %185 = vmatprep.subr.mxu0 0.0
    %186 = vmatpush1.xpose.msra.mxu0 0.0
    %187 = vmatprep.subr.mxu0 0.0
    %188 = vmatpush1.xpose.msra.mxu0 0.0
    %189 = vmatprep.subr.mxu0 0.0
    %190 = vmatpush1.xpose.msra.mxu0 0.0
    %191 = vmatprep.subr.mxu0 0.0
    %192 = vmatpush1.xpose.msra.mxu0 0.0
    %193 = vmatprep.subr.mxu0 0.0
    %194 = vmatpush1.xpose.msra.mxu0 0.0
    %195 = vmatprep.subr.mxu0 0.0
    %196 = vmatpush1.xpose.msra.mxu0 %v84
    %197 = vmatprep.subr.mxu0 0.0
    %198 = vmatpush1.xpose.msra.mxu0 %v81
    %199 = vmatprep.subr.mxu0 0.0
    %200 = vmatpush2.xpose.msra.mxu0 0.0
    %201 = vmatprep.subr.mxu0 0.0
    %202 = vmatpush2.xpose.msra.mxu0 0.0
    %203 = vmatprep.subr.mxu0 0.0
    %204 = vmatpush2.xpose.msra.mxu0 0.0
    %205 = vmatprep.subr.mxu0 0.0
    %206 = vmatpush2.xpose.msra.mxu0 0.0
    %207 = vmatprep.subr.mxu0 0.0
    %208 = vmatpush2.xpose.msra.mxu0 0.0
    %209 = vmatprep.subr.mxu0 0.0
    %210 = vmatpush2.xpose.msra.mxu0 0.0
    %211 = vmatprep.subr.mxu0 0.0
    %212 = vmatpush2.xpose.msra.mxu0 0.0
    %213 = vmatprep.subr.mxu0 0.0
    %214 = vmatpush2.xpose.msra.mxu0 0.0
    %215 = vmatprep.subr.mxu0 0.0
    %216 = vmatpush2.xpose.msra.mxu0 0.0
    %217 = vmatprep.subr.mxu0 0.0
    %218 = vmatpush2.xpose.msra.mxu0 0.0
    %219 = vmatprep.subr.mxu0 0.0
    %220 = vmatpush2.xpose.msra.mxu0 0.0
    %221 = vmatprep.subr.mxu0 0.0
    %222 = vmatpush2.xpose.msra.mxu0 0.0
    %223 = vmatprep.subr.mxu0 0.0
    %224 = vmatpush2.xpose.msra.mxu0 0.0
    %225 = vmatprep.subr.mxu0 0.0
    %226 = vmatpush2.xpose.msra.mxu0 0.0
    %227 = vmatprep.subr.mxu0 0.0
    %228 = vmatpush2.xpose.msra.mxu0 0.0
    %229 = vmatprep.subr.mxu0 0.0
    %230 = vmatpush2.xpose.msra.mxu0 0.0
    %231 = vmatprep.mubr.f32.mxu0 0.0
    %232 = vmatmul.mubr.f32.gmra.mxu0 %v165
    %v233 = vpop.f32.mrf.mxu0
    %v234 = vadd.f32 0.0, %v233
    %v235 = vpop.f32.mrf.mxu0
    %236 = vdwg.mxu0
    %v237 = vld [vmem:[#allocation8 + $0x4] sm:$0x1]
    %v238 = vld [vmem:[#allocation8 + $0x5] sm:$0x1]
    %v239 = vld [vmem:[#allocation8 + $0x6] sm:$0x1]
    %v240 = vld [vmem:[#allocation8 + $0x7] sm:$0x1]
    %242 = vset.pattern.permute.xlu0 0
    %243 = vperm.xlu0 %242, %v155
    %v244 = vpop.permute.xlu0 %243
    %247 = vset.pattern.permute.xlu0 0
    %248 = vperm.xlu0 %247, %v161
    %v249 = vpop.permute.xlu0 %248
    %v251 = vlaneseq
    %v252 = vshrl.u32 %v251, 7
    %v253 = vsub.s32 0, %v252
    %v254 = vrot.slane %v234, %v253
    %v255 = vadd.f32 %v244, %v254
    %v256 = vadd.f32 %v249, %v254
    %vm257 = vcmp.gt.f32.partialorder %v255, 0.0
    %vm258 = vcmp.gt.f32.partialorder %v256, 0.0
    %v259 = vmul.f32 %v255, 0.2
    %v260 = vmul.f32 %v256, 0.2
    %v261 = vsel %vm257, %v255, %v259
    %v262 = vsel %vm258, %v256, %v260
    %vm263 = vcmp.gt.f32.partialorder %v73, 0.0
    %vm264 = vcmp.gt.f32.partialorder %v74, 0.0
    %v265 = vsel %vm263, %v261, -1e+30
    %v266 = vsel %vm264, %v262, -1e+30
    %v267 = vsel %vm79, %v265, -inf
    %268 = vmax.xlane.f32.xlu0 %v267
    %v269 = vpop.xlane.xlu0 %268
    %v270 = vsel %vm79, %v266, -inf
    %271 = vmax.xlane.f32.xlu0 %v270
    %v272 = vpop.xlane.xlu0 %271
    %v273 = vsub.f32 %v265, %v269
    %v274 = vsub.f32 %v266, %v272
    %v275 = vmul.f32 %v273, 1.442695
    %v276 = vpow.pop %v275
    %v277 = vmul.f32 %v274, 1.442695
    %v278 = vpow.pop %v277
    %v279 = vmul.f32 %v276, %v73
    %v280 = vmul.f32 %v278, %v74
    %v281 = vsel %vm79, %v279, 0.0
    %282 = vadd.xlane.f32.xlu0 %v281
    %v283 = vpop.xlane.xlu0 %282
    %v284 = vsel %vm79, %v280, 0.0
    %285 = vadd.xlane.f32.xlu0 %v284
    %v286 = vpop.xlane.xlu0 %285
    %v287 = vmax.f32 %v283, 1e-30
    %v288 = vmax.f32 %v286, 1e-30
    %v289 = vrcp.pop %v287
    %v290 = vrcp.pop %v288
    %v291 = vmul.f32 %v279, %v289
    %v292 = vmul.f32 %v280, %v290
    %293 = vset.pattern.permute.xlu0 1
    %294 = vperm.xlu0 %293, %v155
    %v295 = vpop.permute.xlu0 %294
    %297 = vset.pattern.permute.xlu0 1
    %298 = vperm.xlu0 %297, %v161
    %v299 = vpop.permute.xlu0 %298
    %v301 = vlaneseq
    %v302 = vshrl.u32 %v301, 7
    %v303 = vsub.s32 1, %v302
    %v304 = vrot.slane %v234, %v303
    %v305 = vadd.f32 %v295, %v304
    %v306 = vadd.f32 %v299, %v304
    %vm307 = vcmp.gt.f32.partialorder %v305, 0.0
    %vm308 = vcmp.gt.f32.partialorder %v306, 0.0
    %v309 = vmul.f32 %v305, 0.2
    %v310 = vmul.f32 %v306, 0.2
    %v311 = vsel %vm307, %v305, %v309
    %v312 = vsel %vm308, %v306, %v310
    %v313 = vsel %vm263, %v311, -1e+30
    %v314 = vsel %vm264, %v312, -1e+30
    %v315 = vsel %vm79, %v313, -inf
    %316 = vmax.xlane.f32.xlu0 %v315
    %v317 = vpop.xlane.xlu0 %316
    %v318 = vsel %vm79, %v314, -inf
    %319 = vmax.xlane.f32.xlu0 %v318
    %v320 = vpop.xlane.xlu0 %319
    %v321 = vsub.f32 %v313, %v317
    %v322 = vsub.f32 %v314, %v320
    %v323 = vmul.f32 %v321, 1.442695
    %v324 = vpow.pop %v323
    %v325 = vmul.f32 %v322, 1.442695
    %v326 = vpow.pop %v325
    %v327 = vmul.f32 %v324, %v73
    %v328 = vmul.f32 %v326, %v74
    %v329 = vsel %vm79, %v327, 0.0
    %330 = vadd.xlane.f32.xlu0 %v329
    %v331 = vpop.xlane.xlu0 %330
    %v332 = vsel %vm79, %v328, 0.0
    %333 = vadd.xlane.f32.xlu0 %v332
    %v334 = vpop.xlane.xlu0 %333
    %v335 = vmax.f32 %v331, 1e-30
    %v336 = vmax.f32 %v334, 1e-30
    %v337 = vrcp.pop %v335
    %v338 = vrcp.pop %v336
    %v339 = vmul.f32 %v327, %v337
    %v340 = vmul.f32 %v328, %v338
    %343 = vrot.lane.b32.xlu0 %v153, 96
    %v344 = vpop.permute.xlu0 %343
    %345 = vrot.lane.b32.xlu0 %v159, 96
    %v346 = vpop.permute.xlu0 %345
    %v350 = vsel %vm79, %v339, 0
    %v353 = vsel %vm79, %v340, 0
    %355 = vmatprep.subr.mxu0 0.0
    %356 = vmatpush1.msra.mxu0 0.0
    %357 = vmatprep.subr.mxu0 0.0
    %358 = vmatpush1.msra.mxu0 0.0
    %359 = vmatprep.subr.mxu0 0.0
    %360 = vmatpush1.msra.mxu0 0.0
    %361 = vmatprep.subr.mxu0 0.0
    %362 = vmatpush1.msra.mxu0 0.0
    %363 = vmatprep.subr.mxu0 0.0
    %364 = vmatpush1.msra.mxu0 0.0
    %365 = vmatprep.subr.mxu0 0.0
    %366 = vmatpush1.msra.mxu0 0.0
    %367 = vmatprep.subr.mxu0 0.0
    %368 = vmatpush1.msra.mxu0 0.0
    %369 = vmatprep.subr.mxu0 0.0
    %370 = vmatpush1.msra.mxu0 0.0
    %371 = vmatprep.subr.mxu0 0.0
    %372 = vmatpush1.msra.mxu0 0.0
    %373 = vmatprep.subr.mxu0 0.0
    %374 = vmatpush1.msra.mxu0 0.0
    %375 = vmatprep.subr.mxu0 0.0
    %376 = vmatpush1.msra.mxu0 0.0
    %377 = vmatprep.subr.mxu0 0.0
    %378 = vmatpush1.msra.mxu0 0.0
    %379 = vmatprep.subr.mxu0 0.0
    %380 = vmatpush1.msra.mxu0 0.0
    %381 = vmatprep.subr.mxu0 0.0
    %382 = vmatpush1.msra.mxu0 0.0
    %383 = vmatprep.subr.mxu0 0.0
    %384 = vmatpush1.msra.mxu0 %v346
    %385 = vmatprep.subr.mxu0 0.0
    %386 = vmatpush1.msra.mxu0 %v344
    %387 = vmatprep.subr.mxu0 0.0
    %388 = vmatpush2.msra.mxu0 0.0
    %389 = vmatprep.subr.mxu0 0.0
    %390 = vmatpush2.msra.mxu0 0.0
    %391 = vmatprep.subr.mxu0 0.0
    %392 = vmatpush2.msra.mxu0 0.0
    %393 = vmatprep.subr.mxu0 0.0
    %394 = vmatpush2.msra.mxu0 0.0
    %395 = vmatprep.subr.mxu0 0.0
    %396 = vmatpush2.msra.mxu0 0.0
    %397 = vmatprep.subr.mxu0 0.0
    %398 = vmatpush2.msra.mxu0 0.0
    %399 = vmatprep.subr.mxu0 0.0
    %400 = vmatpush2.msra.mxu0 0.0
    %401 = vmatprep.subr.mxu0 0.0
    %402 = vmatpush2.msra.mxu0 0.0
    %403 = vmatprep.subr.mxu0 0.0
    %404 = vmatpush2.msra.mxu0 0.0
    %405 = vmatprep.subr.mxu0 0.0
    %406 = vmatpush2.msra.mxu0 0.0
    %407 = vmatprep.subr.mxu0 0.0
    %408 = vmatpush2.msra.mxu0 0.0
    %409 = vmatprep.subr.mxu0 0.0
    %410 = vmatpush2.msra.mxu0 0.0
    %411 = vmatprep.subr.mxu0 0.0
    %412 = vmatpush2.msra.mxu0 0.0
    %413 = vmatprep.subr.mxu0 0.0
    %414 = vmatpush2.msra.mxu0 0.0
    %415 = vmatprep.subr.mxu0 0.0
    %416 = vmatpush2.msra.mxu0 0.0
    %417 = vmatprep.subr.mxu0 0.0
    %418 = vmatpush2.msra.mxu0 0.0
    %419 = vmatprep.mubr.f32.mxu0 0.0
    %420 = vmatmul.mubr.f32.gmra.mxu0 %v350
    %v421 = vpop.f32.mrf.mxu0
    %v422 = vadd.f32 0.0, %v421
    %v423 = vpop.f32.mrf.mxu0
    %424 = vmatprep.mubr.f32.mxu0 0.0
    %425 = vmatmul.mubr.f32.gmra.mxu0 %v353
    %v426 = vpop.f32.mrf.mxu0
    %v427 = vadd.f32 0.0, %v426
    %v428 = vpop.f32.mrf.mxu0
    %429 = vdwg.mxu0
    %v431 = vsel %vm79, %v291, 0
    %v434 = vsel %vm79, %v292, 0
    %436 = vmatprep.subr.mxu0 0.0
    %437 = vmatpush1.msra.mxu0 0.0
    %438 = vmatprep.subr.mxu0 0.0
    %439 = vmatpush1.msra.mxu0 0.0
    %440 = vmatprep.subr.mxu0 0.0
    %441 = vmatpush1.msra.mxu0 0.0
    %442 = vmatprep.subr.mxu0 0.0
    %443 = vmatpush1.msra.mxu0 0.0
    %444 = vmatprep.subr.mxu0 0.0
    %445 = vmatpush1.msra.mxu0 0.0
    %446 = vmatprep.subr.mxu0 0.0
    %447 = vmatpush1.msra.mxu0 0.0
    %448 = vmatprep.subr.mxu0 0.0
    %449 = vmatpush1.msra.mxu0 0.0
    %450 = vmatprep.subr.mxu0 0.0
    %451 = vmatpush1.msra.mxu0 0.0
    %452 = vmatprep.subr.mxu0 0.0
    %453 = vmatpush1.msra.mxu0 0.0
    %454 = vmatprep.subr.mxu0 0.0
    %455 = vmatpush1.msra.mxu0 0.0
    %456 = vmatprep.subr.mxu0 0.0
    %457 = vmatpush1.msra.mxu0 0.0
    %458 = vmatprep.subr.mxu0 0.0
    %459 = vmatpush1.msra.mxu0 0.0
    %460 = vmatprep.subr.mxu0 0.0
    %461 = vmatpush1.msra.mxu0 0.0
    %462 = vmatprep.subr.mxu0 0.0
    %463 = vmatpush1.msra.mxu0 0.0
    %464 = vmatprep.subr.mxu0 0.0
    %465 = vmatpush1.msra.mxu0 %v159
    %466 = vmatprep.subr.mxu0 0.0
    %467 = vmatpush1.msra.mxu0 %v153
    %468 = vmatprep.subr.mxu0 0.0
    %469 = vmatpush2.msra.mxu0 0.0
    %470 = vmatprep.subr.mxu0 0.0
    %471 = vmatpush2.msra.mxu0 0.0
    %472 = vmatprep.subr.mxu0 0.0
    %473 = vmatpush2.msra.mxu0 0.0
    %474 = vmatprep.subr.mxu0 0.0
    %475 = vmatpush2.msra.mxu0 0.0
    %476 = vmatprep.subr.mxu0 0.0
    %477 = vmatpush2.msra.mxu0 0.0
    %478 = vmatprep.subr.mxu0 0.0
    %479 = vmatpush2.msra.mxu0 0.0
    %480 = vmatprep.subr.mxu0 0.0
    %481 = vmatpush2.msra.mxu0 0.0
    %482 = vmatprep.subr.mxu0 0.0
    %483 = vmatpush2.msra.mxu0 0.0
    %484 = vmatprep.subr.mxu0 0.0
    %485 = vmatpush2.msra.mxu0 0.0
    %486 = vmatprep.subr.mxu0 0.0
    %487 = vmatpush2.msra.mxu0 0.0
    %488 = vmatprep.subr.mxu0 0.0
    %489 = vmatpush2.msra.mxu0 0.0
    %490 = vmatprep.subr.mxu0 0.0
    %491 = vmatpush2.msra.mxu0 0.0
    %492 = vmatprep.subr.mxu0 0.0
    %493 = vmatpush2.msra.mxu0 0.0
    %494 = vmatprep.subr.mxu0 0.0
    %495 = vmatpush2.msra.mxu0 0.0
    %496 = vmatprep.subr.mxu0 0.0
    %497 = vmatpush2.msra.mxu0 0.0
    %498 = vmatprep.subr.mxu0 0.0
    %499 = vmatpush2.msra.mxu0 0.0
    %500 = vmatprep.mubr.f32.mxu0 0.0
    %501 = vmatmul.mubr.f32.gmra.mxu0 %v431
    %v502 = vpop.f32.mrf.mxu0
    %v503 = vadd.f32 %v422, %v502
    %v504 = vpop.f32.mrf.mxu0
    %505 = vmatprep.mubr.f32.mxu0 0.0
    %506 = vmatmul.mubr.f32.gmra.mxu0 %v434
    %v507 = vpop.f32.mrf.mxu0
    %v508 = vadd.f32 %v427, %v507
    %v509 = vpop.f32.mrf.mxu0
    %510 = vdwg.mxu0
    %511 = vset.pattern.permute.xlu0 2
    %512 = vperm.xlu0 %511, %v155
    %v513 = vpop.permute.xlu0 %512
    %515 = vset.pattern.permute.xlu0 2
    %516 = vperm.xlu0 %515, %v161
    %v517 = vpop.permute.xlu0 %516
    %v519 = vlaneseq
    %v520 = vshrl.u32 %v519, 7
    %v521 = vsub.s32 2, %v520
    %v522 = vrot.slane %v234, %v521
    %v523 = vadd.f32 %v513, %v522
    %v524 = vadd.f32 %v517, %v522
    %vm525 = vcmp.gt.f32.partialorder %v523, 0.0
    %vm526 = vcmp.gt.f32.partialorder %v524, 0.0
    %v527 = vmul.f32 %v523, 0.2
    %v528 = vmul.f32 %v524, 0.2
    %v529 = vsel %vm525, %v523, %v527
    %v530 = vsel %vm526, %v524, %v528
    %v531 = vsel %vm263, %v529, -1e+30
    %v532 = vsel %vm264, %v530, -1e+30
    %v533 = vsel %vm79, %v531, -inf
    %534 = vmax.xlane.f32.xlu0 %v533
    %v535 = vpop.xlane.xlu0 %534
    %v536 = vsel %vm79, %v532, -inf
    %537 = vmax.xlane.f32.xlu0 %v536
    %v538 = vpop.xlane.xlu0 %537
    %v539 = vsub.f32 %v531, %v535
    %v540 = vsub.f32 %v532, %v538
    %v541 = vmul.f32 %v539, 1.442695
    %v542 = vpow.pop %v541
    %v543 = vmul.f32 %v540, 1.442695
    %v544 = vpow.pop %v543
    %v545 = vmul.f32 %v542, %v73
    %v546 = vmul.f32 %v544, %v74
    %v547 = vsel %vm79, %v545, 0.0
    %548 = vadd.xlane.f32.xlu0 %v547
    %v549 = vpop.xlane.xlu0 %548
    %v550 = vsel %vm79, %v546, 0.0
    %551 = vadd.xlane.f32.xlu0 %v550
    %v552 = vpop.xlane.xlu0 %551
    %v553 = vmax.f32 %v549, 1e-30
    %v554 = vmax.f32 %v552, 1e-30
    %v555 = vrcp.pop %v553
    %v556 = vrcp.pop %v554
    %v557 = vmul.f32 %v545, %v555
    %v558 = vmul.f32 %v546, %v556
    %559 = vrot.lane.b32.xlu0 %v153, 64
    %v560 = vpop.permute.xlu0 %559
    %561 = vrot.lane.b32.xlu0 %v159, 64
    %v562 = vpop.permute.xlu0 %561
    %v566 = vsel %vm79, %v557, 0
    %v569 = vsel %vm79, %v558, 0
    %571 = vmatprep.subr.mxu0 0.0
    %572 = vmatpush1.msra.mxu0 0.0
    %573 = vmatprep.subr.mxu0 0.0
    %574 = vmatpush1.msra.mxu0 0.0
    %575 = vmatprep.subr.mxu0 0.0
    %576 = vmatpush1.msra.mxu0 0.0
    %577 = vmatprep.subr.mxu0 0.0
    %578 = vmatpush1.msra.mxu0 0.0
    %579 = vmatprep.subr.mxu0 0.0
    %580 = vmatpush1.msra.mxu0 0.0
    %581 = vmatprep.subr.mxu0 0.0
    %582 = vmatpush1.msra.mxu0 0.0
    %583 = vmatprep.subr.mxu0 0.0
    %584 = vmatpush1.msra.mxu0 0.0
    %585 = vmatprep.subr.mxu0 0.0
    %586 = vmatpush1.msra.mxu0 0.0
    %587 = vmatprep.subr.mxu0 0.0
    %588 = vmatpush1.msra.mxu0 0.0
    %589 = vmatprep.subr.mxu0 0.0
    %590 = vmatpush1.msra.mxu0 0.0
    %591 = vmatprep.subr.mxu0 0.0
    %592 = vmatpush1.msra.mxu0 0.0
    %593 = vmatprep.subr.mxu0 0.0
    %594 = vmatpush1.msra.mxu0 0.0
    %595 = vmatprep.subr.mxu0 0.0
    %596 = vmatpush1.msra.mxu0 0.0
    %597 = vmatprep.subr.mxu0 0.0
    %598 = vmatpush1.msra.mxu0 0.0
    %599 = vmatprep.subr.mxu0 0.0
    %600 = vmatpush1.msra.mxu0 %v562
    %601 = vmatprep.subr.mxu0 0.0
    %602 = vmatpush1.msra.mxu0 %v560
    %603 = vmatprep.subr.mxu0 0.0
    %604 = vmatpush2.msra.mxu0 0.0
    %605 = vmatprep.subr.mxu0 0.0
    %606 = vmatpush2.msra.mxu0 0.0
    %607 = vmatprep.subr.mxu0 0.0
    %608 = vmatpush2.msra.mxu0 0.0
    %609 = vmatprep.subr.mxu0 0.0
    %610 = vmatpush2.msra.mxu0 0.0
    %611 = vmatprep.subr.mxu0 0.0
    %612 = vmatpush2.msra.mxu0 0.0
    %613 = vmatprep.subr.mxu0 0.0
    %614 = vmatpush2.msra.mxu0 0.0
    %615 = vmatprep.subr.mxu0 0.0
    %616 = vmatpush2.msra.mxu0 0.0
    %617 = vmatprep.subr.mxu0 0.0
    %618 = vmatpush2.msra.mxu0 0.0
    %619 = vmatprep.subr.mxu0 0.0
    %620 = vmatpush2.msra.mxu0 0.0
    %621 = vmatprep.subr.mxu0 0.0
    %622 = vmatpush2.msra.mxu0 0.0
    %623 = vmatprep.subr.mxu0 0.0
    %624 = vmatpush2.msra.mxu0 0.0
    %625 = vmatprep.subr.mxu0 0.0
    %626 = vmatpush2.msra.mxu0 0.0
    %627 = vmatprep.subr.mxu0 0.0
    %628 = vmatpush2.msra.mxu0 0.0
    %629 = vmatprep.subr.mxu0 0.0
    %630 = vmatpush2.msra.mxu0 0.0
    %631 = vmatprep.subr.mxu0 0.0
    %632 = vmatpush2.msra.mxu0 0.0
    %633 = vmatprep.subr.mxu0 0.0
    %634 = vmatpush2.msra.mxu0 0.0
    %635 = vmatprep.mubr.f32.mxu0 0.0
    %636 = vmatmul.mubr.f32.gmra.mxu0 %v566
    %v637 = vpop.f32.mrf.mxu0
    %v638 = vadd.f32 0.0, %v637
    %v639 = vpop.f32.mrf.mxu0
    %640 = vmatprep.mubr.f32.mxu0 0.0
    %641 = vmatmul.mubr.f32.gmra.mxu0 %v569
    %v642 = vpop.f32.mrf.mxu0
    %v643 = vadd.f32 0.0, %v642
    %v644 = vpop.f32.mrf.mxu0
    %645 = vdwg.mxu0
    %v646 = vadd.f32 %v503, %v638
    %v647 = vadd.f32 %v508, %v643
    %648 = vset.pattern.permute.xlu0 3
    %649 = vperm.xlu0 %648, %v155
    %v650 = vpop.permute.xlu0 %649
    %652 = vset.pattern.permute.xlu0 3
    %653 = vperm.xlu0 %652, %v161
    %v654 = vpop.permute.xlu0 %653
    %v656 = vlaneseq
    %v657 = vshrl.u32 %v656, 7
    %v658 = vsub.s32 3, %v657
    %v659 = vrot.slane %v234, %v658
    %v660 = vadd.f32 %v650, %v659
    %v661 = vadd.f32 %v654, %v659
    %vm662 = vcmp.gt.f32.partialorder %v660, 0.0
    %vm663 = vcmp.gt.f32.partialorder %v661, 0.0
    %v664 = vmul.f32 %v660, 0.2
    %v665 = vmul.f32 %v661, 0.2
    %v666 = vsel %vm662, %v660, %v664
    %v667 = vsel %vm663, %v661, %v665
    %v668 = vsel %vm263, %v666, -1e+30
    %v669 = vsel %vm264, %v667, -1e+30
    %v670 = vsel %vm79, %v668, -inf
    %671 = vmax.xlane.f32.xlu0 %v670
    %v672 = vpop.xlane.xlu0 %671
    %v673 = vsel %vm79, %v669, -inf
    %674 = vmax.xlane.f32.xlu0 %v673
    %v675 = vpop.xlane.xlu0 %674
    %v676 = vsub.f32 %v668, %v672
    %v677 = vsub.f32 %v669, %v675
    %v678 = vmul.f32 %v676, 1.442695
    %v679 = vpow.pop %v678
    %v680 = vmul.f32 %v677, 1.442695
    %v681 = vpow.pop %v680
    %v682 = vmul.f32 %v679, %v73
    %v683 = vmul.f32 %v681, %v74
    %v684 = vsel %vm79, %v682, 0.0
    %685 = vadd.xlane.f32.xlu0 %v684
    %v686 = vpop.xlane.xlu0 %685
    %v687 = vsel %vm79, %v683, 0.0
    %688 = vadd.xlane.f32.xlu0 %v687
    %v689 = vpop.xlane.xlu0 %688
    %v690 = vmax.f32 %v686, 1e-30
    %v691 = vmax.f32 %v689, 1e-30
    %v692 = vrcp.pop %v690
    %v693 = vrcp.pop %v691
    %v694 = vmul.f32 %v682, %v692
    %v695 = vmul.f32 %v683, %v693
    %696 = vrot.lane.b32.xlu0 %v153, 32
    %v697 = vpop.permute.xlu0 %696
    %698 = vrot.lane.b32.xlu0 %v159, 32
    %v699 = vpop.permute.xlu0 %698
    %v703 = vsel %vm79, %v694, 0
    %v706 = vsel %vm79, %v695, 0
    %708 = vmatprep.subr.mxu0 0.0
    %709 = vmatpush1.msra.mxu0 0.0
    %710 = vmatprep.subr.mxu0 0.0
    %711 = vmatpush1.msra.mxu0 0.0
    %712 = vmatprep.subr.mxu0 0.0
    %713 = vmatpush1.msra.mxu0 0.0
    %714 = vmatprep.subr.mxu0 0.0
    %715 = vmatpush1.msra.mxu0 0.0
    %716 = vmatprep.subr.mxu0 0.0
    %717 = vmatpush1.msra.mxu0 0.0
    %718 = vmatprep.subr.mxu0 0.0
    %719 = vmatpush1.msra.mxu0 0.0
    %720 = vmatprep.subr.mxu0 0.0
    %721 = vmatpush1.msra.mxu0 0.0
    %722 = vmatprep.subr.mxu0 0.0
    %723 = vmatpush1.msra.mxu0 0.0
    %724 = vmatprep.subr.mxu0 0.0
    %725 = vmatpush1.msra.mxu0 0.0
    %726 = vmatprep.subr.mxu0 0.0
    %727 = vmatpush1.msra.mxu0 0.0
    %728 = vmatprep.subr.mxu0 0.0
    %729 = vmatpush1.msra.mxu0 0.0
    %730 = vmatprep.subr.mxu0 0.0
    %731 = vmatpush1.msra.mxu0 0.0
    %732 = vmatprep.subr.mxu0 0.0
    %733 = vmatpush1.msra.mxu0 0.0
    %734 = vmatprep.subr.mxu0 0.0
    %735 = vmatpush1.msra.mxu0 0.0
    %736 = vmatprep.subr.mxu0 0.0
    %737 = vmatpush1.msra.mxu0 %v699
    %738 = vmatprep.subr.mxu0 0.0
    %739 = vmatpush1.msra.mxu0 %v697
    %740 = vmatprep.subr.mxu0 0.0
    %741 = vmatpush2.msra.mxu0 0.0
    %742 = vmatprep.subr.mxu0 0.0
    %743 = vmatpush2.msra.mxu0 0.0
    %744 = vmatprep.subr.mxu0 0.0
    %745 = vmatpush2.msra.mxu0 0.0
    %746 = vmatprep.subr.mxu0 0.0
    %747 = vmatpush2.msra.mxu0 0.0
    %748 = vmatprep.subr.mxu0 0.0
    %749 = vmatpush2.msra.mxu0 0.0
    %750 = vmatprep.subr.mxu0 0.0
    %751 = vmatpush2.msra.mxu0 0.0
    %752 = vmatprep.subr.mxu0 0.0
    %753 = vmatpush2.msra.mxu0 0.0
    %754 = vmatprep.subr.mxu0 0.0
    %755 = vmatpush2.msra.mxu0 0.0
    %756 = vmatprep.subr.mxu0 0.0
    %757 = vmatpush2.msra.mxu0 0.0
    %758 = vmatprep.subr.mxu0 0.0
    %759 = vmatpush2.msra.mxu0 0.0
    %760 = vmatprep.subr.mxu0 0.0
    %761 = vmatpush2.msra.mxu0 0.0
    %762 = vmatprep.subr.mxu0 0.0
    %763 = vmatpush2.msra.mxu0 0.0
    %764 = vmatprep.subr.mxu0 0.0
    %765 = vmatpush2.msra.mxu0 0.0
    %766 = vmatprep.subr.mxu0 0.0
    %767 = vmatpush2.msra.mxu0 0.0
    %768 = vmatprep.subr.mxu0 0.0
    %769 = vmatpush2.msra.mxu0 0.0
    %770 = vmatprep.subr.mxu0 0.0
    %771 = vmatpush2.msra.mxu0 0.0
    %772 = vmatprep.mubr.f32.mxu0 0.0
    %773 = vmatmul.mubr.f32.gmra.mxu0 %v703
    %v774 = vpop.f32.mrf.mxu0
    %v775 = vadd.f32 0.0, %v774
    %v776 = vpop.f32.mrf.mxu0
    %777 = vmatprep.mubr.f32.mxu0 0.0
    %778 = vmatmul.mubr.f32.gmra.mxu0 %v706
    %v779 = vpop.f32.mrf.mxu0
    %v780 = vadd.f32 0.0, %v779
    %v781 = vpop.f32.mrf.mxu0
    %782 = vdwg.mxu0
    %v783 = vadd.f32 %v646, %v775
    %v784 = vadd.f32 %v647, %v780
    %v785 = vmul.f32 %v783, 0.25
    %v786 = vmul.f32 %v784, 0.25
    %v787 = vlaneseq
    %v788 = vshrl.u32 %v787, 7
    %v789 = vsub.s32 0, %v788
    %v790 = vrot.slane %v237, %v789
    %v791 = vadd.f32 %v785, %v790
    %v792 = vadd.f32 %v786, %v790
    %vm793 = vcmask 261120
    %v794 = vsel %vm793, %v791, 0.0
    %795 = vadd.xlane.f32.xlu0 %v794
    %v796 = vpop.xlane.xlu0 %795
    %v797 = vsel %vm793, %v792, 0.0
    %798 = vadd.xlane.f32.xlu0 %v797
    %v799 = vpop.xlane.xlu0 %798
    %v800 = vrcp.pop 32.0
    %v801 = vmul.f32 %v796, %v800
    %v802 = vmul.f32 %v799, %v800
    %v803 = vsub.f32 %v791, %v801
    %v804 = vsub.f32 %v792, %v802
    %v805 = vmul.f32 %v803, %v803
    %v806 = vmul.f32 %v804, %v804
    %v807 = vsel %vm793, %v805, 0.0
    %808 = vadd.xlane.f32.xlu0 %v807
    %v809 = vpop.xlane.xlu0 %808
    %v810 = vsel %vm793, %v806, 0.0
    %811 = vadd.xlane.f32.xlu0 %v810
    %v812 = vpop.xlane.xlu0 %811
    %v813 = vmul.f32 %v809, %v800
    %v814 = vmul.f32 %v812, %v800
    %v815 = vadd.f32 %v813, 1e-05
    %v816 = vadd.f32 %v814, 1e-05
    %v817 = vrsqrt.pop %v815
    %v818 = vrsqrt.pop %v816
    %v819 = vmul.f32 %v803, %v817
    %v820 = vmul.f32 %v804, %v818
    %v821 = vlaneseq
    %v822 = vshrl.u32 %v821, 7
    %v823 = vsub.s32 0, %v822
    %v824 = vrot.slane %v238, %v823
    %v825 = vmul.f32 %v819, %v824
    %v826 = vmul.f32 %v820, %v824
    %v827 = vlaneseq
    %v828 = vshrl.u32 %v827, 7
    %v829 = vsub.s32 0, %v828
    %v830 = vrot.slane %v239, %v829
    %v831 = vadd.f32 %v825, %v830
    %v832 = vadd.f32 %v826, %v830
    %833 = vrot.lane.b32.xlu0 %v155, 124
    %v834 = vpop.permute.xlu0 %833
    %835 = vrot.lane.b32.xlu0 %v161, 124
    %v836 = vpop.permute.xlu0 %835
    %v839 = vadd.f32 %v831, %v834
    %v840 = vadd.f32 %v832, %v836
    %v841 = vlaneseq
    %v842 = vshrl.u32 %v841, 7
    %v843 = vsub.s32 0, %v842
    %v844 = vrot.slane %v240, %v843
    %v845 = vadd.f32 %v839, %v844
    %v846 = vadd.f32 %v840, %v844
    %847 = vst.msk [vmem:[#allocation10] sm:$0xff] %vm793, %v845
    %848 = vst.msk [vmem:[#allocation10 + $0x8] sm:$0xff] %vm793, %v846
    // Predicated region
    $region34: #{tpu_custom_call.1} parent=1 // pred_check
      _
    $region35: #{tpu_custom_call.1} parent=1 // pred_check_branch
      %850 = sbr.rel (0) target = $region37
    $region36: #{tpu_custom_call.1} parent=1 // pred_region
      %s852 = ssub.s32 256, 256
      %853 = vsyncadd [#allocation4], %s852
      %s854 = sshll.u32 [#allocation10], 4
      %s855 = int_to_ptr.vmem [resolvable:$true] %s854
      %860 = dma.vmem_to_hbm [thread:$0]  %s855, 256, %s4, [#allocation4], 128, 128, 8
    $region37: #{tpu_custom_call.1} parent=1 // pred_fallthru
      _
    // Predicated region
    $region38: #{tpu_custom_call.1} parent=1 // pred_check
      _
    $region39: #{tpu_custom_call.1} parent=1 // pred_check_branch
      %862 = sbr.rel (0) target = $region41
    $region40: #{tpu_custom_call.1} parent=1 // pred_region
      %863 = dma.done [#allocation4], 256
    $region41: #{tpu_custom_call.1} parent=1 // pred_fallthru
      _
    %864 = vsyncpa [#allocation3], 1
    %865 = vsyncpa [#allocation6], 1
    %866 = vsyncpa [#allocation9], 1
    %867 = vsyncpa [#allocation4], 1

</llo_original>
